<compile_context>
chip_gen: v7x
topology: tpu7x:2x2x1
jax: 0.10.0
libtpu: 0.0.40
codegen_flags: <defaults>
</compile_context>

<pallas_src>
import jax
import jax.numpy as jnp
from jax import lax
from jax.experimental import pallas as pl
from jax.experimental.pallas import tpu as pltpu

# ---- model hyperparameters (stand-ins for `args`) ----
CLASS_NUM = 4
FILTER_NUM = 8
FILTER_SIZES = (3, 4, 5)
VOCAB_SIZE = 32
EMBED_DIM = 16
SEQ_LEN = 8
BATCH = 16

K_MIN = min(FILTER_SIZES)
K_MAX = max(FILTER_SIZES)
T_OUT = SEQ_LEN - K_MIN + 1              # time positions evaluated by the fused conv
L_PAD = SEQ_LEN + (K_MAX - K_MIN)        # padded time so every size-K_MAX window exists
F3 = len(FILTER_SIZES) * FILTER_NUM      # concatenated pooled features (3F)

LANE = 128
F3_PAD = ((max(F3, 1) + LANE - 1) // LANE) * LANE     # lane-dense feature axis (128)
C_PAD = ((max(CLASS_NUM, 1) + LANE - 1) // LANE) * LANE
V_PAD = ((VOCAB_SIZE + LANE - 1) // LANE) * LANE
BIAS_LANE = F3_PAD - 1                   # constant-1 lane carrying the FC bias
T_MASK = ((T_OUT + 7) // 8) * 8          # sublane-padded rows of the bias/mask operand

TB_MAX = 256                             # per-tile batch cap (M = T_OUT*TB <= 1536)
NEG_MASK = -1e30                         # "-inf" for invalid (t, filter) positions

assert BIAS_LANE >= F3


def textcnn_kernel(tok_ref, wconv_ref, biasmask_ref, wfc_ref, out_ref):
    """One batch tile: one-hot im2col -> fused gather+conv matmul ->
    bias/mask add -> max over time -> ReLU -> FC (bias folded into weight)."""
    tok = tok_ref[...]                                   # (L_PAD*TB, 1) int32, time-major
    rows = tok.shape[0]
    tb = rows // L_PAD
    n_out = T_OUT * tb

    # one-hot tokens directly in the matmul dtype (bf16); V_PAD = 128 lanes.
    vocab_iota = lax.broadcasted_iota(jnp.int32, (rows, V_PAD), 1)
    onehot = (tok == vocab_iota).astype(jnp.bfloat16)    # (rows, 128)

    # im2col over taps: tap i is an 8-aligned sublane shift of i*tb rows; each
    # tap is a full 128-lane block, so the lane concat is layout-clean.
    wins = jnp.concatenate(
        [onehot[i * tb:i * tb + n_out, :] for i in range(K_MAX)], axis=1)

    # fused embedding-gather + 3-filter conv: (n_out, 640) @ (640, 128) bf16,
    # f32 accumulation.  Padded feature columns of wconv are zero.
    scores = jnp.dot(wins, wconv_ref[...],
                     preferred_element_type=jnp.float32)  # (n_out, F3_PAD) f32

    # conv bias + time-validity mask (one f32 row per time step), max over
    # time in tb-row chunks, then ReLU (max and ReLU commute).
    bm = biasmask_ref[...]                               # (T_MASK, F3_PAD) f32
    pooled = scores[0:tb, :] + bm[0:1, :]
    for t in range(1, T_OUT):
        pooled = jnp.maximum(pooled,
                             scores[t * tb:(t + 1) * tb, :] + bm[t:t + 1, :])
    pooled = jnp.maximum(pooled, 0.0)                    # (tb, F3_PAD) f32

    # dropout is identity at inference.  Fold the FC bias in via a constant-1
    # lane (all padded feature columns are exactly 0 after ReLU).
    lane = lax.broadcasted_iota(jnp.int32, pooled.shape, 1)
    pooled = jnp.where(lane == BIAS_LANE, 1.0, pooled)

    out_ref[...] = jnp.dot(pooled.astype(jnp.bfloat16), wfc_ref[...],
                           preferred_element_type=jnp.float32)


def pack_params(p):
    """Fold the torch-layout parameters into three lane-dense kernel operands."""
    D, F = EMBED_DIM, FILTER_NUM
    table = jnp.zeros((V_PAD, D), jnp.float32).at[:VOCAB_SIZE].set(p["embedding"])

    # fused gather+conv weight: row block i (V_PAD rows) of filter k's columns
    # holds table @ W_k[i] (zero for taps i >= k and for padded columns).
    wconv = jnp.zeros((K_MAX * V_PAD, F3_PAD), jnp.float32)
    # per-time-step fused conv bias + validity mask (NEG_MASK where a window
    # of size k would run past the true sequence).
    biasmask = jnp.zeros((T_MASK, F3_PAD), jnp.float32)
    for j, k in enumerate(FILTER_SIZES):
        W = p[f"w{k}"]                                   # (k, D, F)
        for i in range(k):
            wconv = wconv.at[i * V_PAD:(i + 1) * V_PAD,
                             j * F:(j + 1) * F].set(table @ W[i])
        biasmask = biasmask.at[:T_OUT, j * F:(j + 1) * F].set(p[f"b{k}"][0][None, :])
        biasmask = biasmask.at[SEQ_LEN - k + 1:T_OUT, j * F:(j + 1) * F].set(NEG_MASK)

    # FC weight with the bias folded into the constant-1 lane's row.
    wfc = jnp.zeros((F3_PAD, C_PAD), jnp.float32).at[:F3, :CLASS_NUM].set(p["wfc"])
    wfc = wfc.at[BIAS_LANE, :CLASS_NUM].set(p["bfc"][0])

    return dict(wconv=wconv.astype(jnp.bfloat16),
                biasmask=biasmask,
                wfc=wfc.astype(jnp.bfloat16))


def _tiling(batch):
    """Pick (TB, n_tiles): >=2 tiles whenever possible so both v7x TensorCores
    get work (the extra ~0.35us grid step on 1-TC v5e/v6e is noise); cap TB at
    TB_MAX so M = T_OUT*TB fills the MXU while VMEM stays ~2 MiB per tile."""
    n_tiles = max(2, pl.cdiv(batch, TB_MAX)) if batch > 8 else 1
    tb = ((pl.cdiv(batch, n_tiles) + 7) // 8) * 8
    return tb, pl.cdiv(batch, tb)


@jax.jit
def textcnn_forward(tokens, packed):
    B, L = tokens.shape
    tb, n_tiles = _tiling(B)
    b_pad = n_tiles * tb
    rows = L_PAD * tb

    # Pad batch to n_tiles*tb and time to L_PAD (pad token 0 only ever hits
    # zero weight-blocks or masked time positions), then lay each batch tile
    # out time-major: row = g*rows + t*tb + b.
    tok = jnp.zeros((b_pad, L_PAD), jnp.int32).at[:B, :L].set(tokens)
    tok_col = (tok.reshape(n_tiles, tb, L_PAD)
                  .transpose(0, 2, 1)
                  .reshape(n_tiles * rows, 1))

    const2 = lambda i: (0, 0)
    out = pl.pallas_call(
        textcnn_kernel,
        out_shape=jax.ShapeDtypeStruct((b_pad, C_PAD), jnp.float32),
        grid_spec=pltpu.PrefetchScalarGridSpec(
            num_scalar_prefetch=0,
            grid=(n_tiles,),
            in_specs=[
                pl.BlockSpec((rows, 1), lambda i: (i, 0)),         # tokens, streamed per tile
                pl.BlockSpec((K_MAX * V_PAD, F3_PAD), const2),     # fused gather+conv weight
                pl.BlockSpec((T_MASK, F3_PAD), const2),            # conv bias + time mask
                pl.BlockSpec((F3_PAD, C_PAD), const2),             # fc weight (+bias row)
            ],
            out_specs=pl.BlockSpec((tb, C_PAD), lambda i: (i, 0)), # lane-dense logits
        ),
        compiler_params=pltpu.CompilerParams(
            dimension_semantics=("parallel",),   # batch tiles shard across TCs (v7x)
        ),
    )(tok_col, packed["wconv"], packed["biasmask"], packed["wfc"])

    return out[:B, :CLASS_NUM]


def textcnn_reference(tokens, params):
    """Pure-JAX f32 reference matching the PyTorch forward (eval mode)."""
    emb = params["embedding"][tokens]                          # (B, L, D)
    feats = []
    for k in FILTER_SIZES:
        W = params[f"w{k}"]                                    # (k, D, F)
        b = params[f"b{k}"]                                    # (1, F)
        t_out = SEQ_LEN - k + 1
        s = jnp.zeros((tokens.shape[0], t_out, FILTER_NUM), jnp.float32)
        for i in range(k):
            s = s + jnp.einsum("btd,df->btf", emb[:, i:i + t_out, :], W[i])
        s = jnp.maximum(s + b[None], 0.0)
        feats.append(jnp.max(s, axis=1))
    feat = jnp.concatenate(feats, axis=1)                      # (B, 3F)
    return feat @ params["wfc"] + params["bfc"]                # (B, C)


def init_params(key):
    ks = jax.random.split(key, 9)
    p = {}
    # nn.Embedding default init: N(0, 1)
    p["embedding"] = jax.random.normal(ks[0], (VOCAB_SIZE, EMBED_DIM), jnp.float32)
    # nn.Conv2d default init: U(-1/sqrt(fan_in), 1/sqrt(fan_in)), fan_in = 1*k*D
    for idx, k in enumerate(FILTER_SIZES):
        bound = 1.0 / ((1 * k * EMBED_DIM) ** 0.5)
        p[f"w{k}"] = jax.random.uniform(ks[1 + 2 * idx], (k, EMBED_DIM, FILTER_NUM),
                                        jnp.float32, -bound, bound)
        p[f"b{k}"] = jax.random.uniform(ks[2 + 2 * idx], (1, FILTER_NUM),
                                        jnp.float32, -bound, bound)
    # nn.Linear default init: U(-1/sqrt(fan_in), 1/sqrt(fan_in)), fan_in = 3F
    fan_in_fc = len(FILTER_SIZES) * FILTER_NUM
    bound = 1.0 / (fan_in_fc ** 0.5)
    p["wfc"] = jax.random.uniform(ks[7], (fan_in_fc, CLASS_NUM),
                                  jnp.float32, -bound, bound)
    p["bfc"] = jax.random.uniform(ks[8], (1, CLASS_NUM), jnp.float32, -bound, bound)
    return p


if __name__ == "__main__":
    key = jax.random.PRNGKey(0)
    pkey, tkey = jax.random.split(key)
    params = init_params(pkey)
    tokens = jax.random.randint(tkey, (BATCH, SEQ_LEN), 0, VOCAB_SIZE, dtype=jnp.int32)

    packed = pack_params(params)
    logits = textcnn_forward(tokens, packed)
    jax.block_until_ready(logits)
    assert logits.shape == (BATCH, CLASS_NUM), logits.shape

    ref = textcnn_reference(tokens, params)
    err = float(jnp.max(jnp.abs(logits - ref)))
    assert err < 1e-1, f"max abs error vs reference: {err}"   # bf16-matmul tolerance
    print("KERNEL_OK")
</pallas_src>

<mosaic_0001>
module attributes {stable_mosaic.version = 11 : i64} {
  func.func @textcnn_kernel(%arg0: i32, %arg1: memref<80x1xi32, #tpu.memory_space<vmem>>, %arg2: memref<640x128xbf16, #tpu.memory_space<vmem>>, %arg3: memref<8x128xf32, #tpu.memory_space<vmem>>, %arg4: memref<128x128xbf16, #tpu.memory_space<vmem>>, %arg5: memref<8x128xf32, #tpu.memory_space<vmem>>) attributes {dimension_semantics = [#tpu.dimension_semantics<parallel>], iteration_bounds = array<i64: 2>, scalar_prefetch = 0 : i64, scratch_operands = 0 : i64, tpu.core_type = #tpu.core_type<tc>, window_params = [{transform_indices = @transform_0, window_bounds = array<i64: 80, 1>}, {pipeline_mode = #tpu.pipeline_mode<synchronous>, transform_indices = @transform_1, window_bounds = array<i64: 640, 128>}, {pipeline_mode = #tpu.pipeline_mode<synchronous>, transform_indices = @transform_2, window_bounds = array<i64: 8, 128>}, {pipeline_mode = #tpu.pipeline_mode<synchronous>, transform_indices = @transform_3, window_bounds = array<i64: 128, 128>}, {transform_indices = @transform_4, window_bounds = array<i64: 8, 128>}]} {
    %c0 = arith.constant 0 : index
    %c0_0 = arith.constant 0 : index
    %0 = vector.load %arg1[%c0, %c0_0] : memref<80x1xi32, #tpu.memory_space<vmem>>, vector<80x1xi32>
    %1 = tpu.iota {dimensions = array<i32: 1>} : vector<80x128xi32>
    %2 = vector.broadcast %0 : vector<80x1xi32> to vector<80x128xi32>
    %3 = arith.cmpi eq, %2, %1 : vector<80x128xi32>
    %4 = arith.extui %3 : vector<80x128xi1> to vector<80x128xi32>
    %5 = arith.sitofp %4 : vector<80x128xi32> to vector<80x128xf32>
    %6 = arith.truncf %5 : vector<80x128xf32> to vector<80x128xbf16>
    %7 = vector.extract_strided_slice %6 {offsets = [0, 0], sizes = [48, 128], strides = [1, 1]} : vector<80x128xbf16> to vector<48x128xbf16>
    %8 = vector.extract_strided_slice %6 {offsets = [8, 0], sizes = [48, 128], strides = [1, 1]} : vector<80x128xbf16> to vector<48x128xbf16>
    %9 = vector.extract_strided_slice %6 {offsets = [16, 0], sizes = [48, 128], strides = [1, 1]} : vector<80x128xbf16> to vector<48x128xbf16>
    %10 = vector.extract_strided_slice %6 {offsets = [24, 0], sizes = [48, 128], strides = [1, 1]} : vector<80x128xbf16> to vector<48x128xbf16>
    %11 = vector.extract_strided_slice %6 {offsets = [32, 0], sizes = [48, 128], strides = [1, 1]} : vector<80x128xbf16> to vector<48x128xbf16>
    %12 = tpu.concatenate %7, %8, %9, %10, %11 in 1 : vector<48x128xbf16>, vector<48x128xbf16>, vector<48x128xbf16>, vector<48x128xbf16>, vector<48x128xbf16> -> vector<48x640xbf16>
    %c0_1 = arith.constant 0 : index
    %c0_2 = arith.constant 0 : index
    %13 = vector.load %arg2[%c0_1, %c0_2] : memref<640x128xbf16, #tpu.memory_space<vmem>>, vector<640x128xbf16>
    %cst = arith.constant dense<0.000000e+00> : vector<48x128xf32>
    %14 = tpu.matmul %12, %13, %cst {dimension_numbers = #tpu.dot_dimension_numbers<[1], [0], [0], [1], [0, 0, 1, 1], [], []>} : vector<48x640xbf16>, vector<640x128xbf16>, vector<48x128xf32> -> vector<48x128xf32>
    %c0_3 = arith.constant 0 : index
    %c0_4 = arith.constant 0 : index
    %15 = vector.load %arg3[%c0_3, %c0_4] : memref<8x128xf32, #tpu.memory_space<vmem>>, vector<8x128xf32>
    %16 = vector.extract_strided_slice %14 {offsets = [0, 0], sizes = [8, 128], strides = [1, 1]} : vector<48x128xf32> to vector<8x128xf32>
    %17 = vector.extract_strided_slice %15 {offsets = [0, 0], sizes = [1, 128], strides = [1, 1]} : vector<8x128xf32> to vector<1x128xf32>
    %18 = vector.broadcast %17 : vector<1x128xf32> to vector<8x128xf32>
    %19 = arith.addf %16, %18 : vector<8x128xf32>
    %20 = vector.extract_strided_slice %14 {offsets = [8, 0], sizes = [8, 128], strides = [1, 1]} : vector<48x128xf32> to vector<8x128xf32>
    %21 = vector.extract_strided_slice %15 {offsets = [1, 0], sizes = [1, 128], strides = [1, 1]} : vector<8x128xf32> to vector<1x128xf32>
    %22 = vector.broadcast %21 : vector<1x128xf32> to vector<8x128xf32>
    %23 = arith.addf %20, %22 : vector<8x128xf32>
    %24 = arith.maximumf %19, %23 : vector<8x128xf32>
    %25 = vector.extract_strided_slice %14 {offsets = [16, 0], sizes = [8, 128], strides = [1, 1]} : vector<48x128xf32> to vector<8x128xf32>
    %26 = vector.extract_strided_slice %15 {offsets = [2, 0], sizes = [1, 128], strides = [1, 1]} : vector<8x128xf32> to vector<1x128xf32>
    %27 = vector.broadcast %26 : vector<1x128xf32> to vector<8x128xf32>
    %28 = arith.addf %25, %27 : vector<8x128xf32>
    %29 = arith.maximumf %24, %28 : vector<8x128xf32>
    %30 = vector.extract_strided_slice %14 {offsets = [24, 0], sizes = [8, 128], strides = [1, 1]} : vector<48x128xf32> to vector<8x128xf32>
    %31 = vector.extract_strided_slice %15 {offsets = [3, 0], sizes = [1, 128], strides = [1, 1]} : vector<8x128xf32> to vector<1x128xf32>
    %32 = vector.broadcast %31 : vector<1x128xf32> to vector<8x128xf32>
    %33 = arith.addf %30, %32 : vector<8x128xf32>
    %34 = arith.maximumf %29, %33 : vector<8x128xf32>
    %35 = vector.extract_strided_slice %14 {offsets = [32, 0], sizes = [8, 128], strides = [1, 1]} : vector<48x128xf32> to vector<8x128xf32>
    %36 = vector.extract_strided_slice %15 {offsets = [4, 0], sizes = [1, 128], strides = [1, 1]} : vector<8x128xf32> to vector<1x128xf32>
    %37 = vector.broadcast %36 : vector<1x128xf32> to vector<8x128xf32>
    %38 = arith.addf %35, %37 : vector<8x128xf32>
    %39 = arith.maximumf %34, %38 : vector<8x128xf32>
    %40 = vector.extract_strided_slice %14 {offsets = [40, 0], sizes = [8, 128], strides = [1, 1]} : vector<48x128xf32> to vector<8x128xf32>
    %41 = vector.extract_strided_slice %15 {offsets = [5, 0], sizes = [1, 128], strides = [1, 1]} : vector<8x128xf32> to vector<1x128xf32>
    %42 = vector.broadcast %41 : vector<1x128xf32> to vector<8x128xf32>
    %43 = arith.addf %40, %42 : vector<8x128xf32>
    %44 = arith.maximumf %39, %43 : vector<8x128xf32>
    %cst_5 = arith.constant 0.000000e+00 : f32
    %45 = vector.broadcast %cst_5 : f32 to vector<8x128xf32>
    %46 = arith.maximumf %44, %45 : vector<8x128xf32>
    %47 = tpu.iota {dimensions = array<i32: 1>} : vector<8x128xi32>
    %c127_i32 = arith.constant 127 : i32
    %48 = vector.broadcast %c127_i32 : i32 to vector<8x128xi32>
    %49 = arith.cmpi eq, %47, %48 : vector<8x128xi32>
    %cst_6 = arith.constant 1.000000e+00 : f32
    %50 = vector.broadcast %cst_6 : f32 to vector<8x128xf32>
    %51 = arith.select %49, %50, %46 : vector<8x128xi1>, vector<8x128xf32>
    %52 = arith.truncf %51 : vector<8x128xf32> to vector<8x128xbf16>
    %c0_7 = arith.constant 0 : index
    %c0_8 = arith.constant 0 : index
    %53 = vector.load %arg4[%c0_7, %c0_8] : memref<128x128xbf16, #tpu.memory_space<vmem>>, vector<128x128xbf16>
    %cst_9 = arith.constant dense<0.000000e+00> : vector<8x128xf32>
    %54 = tpu.matmul %52, %53, %cst_9 {dimension_numbers = #tpu.dot_dimension_numbers<[1], [0], [0], [1], [0, 0, 1, 1], [], []>} : vector<8x128xbf16>, vector<128x128xbf16>, vector<8x128xf32> -> vector<8x128xf32>
    %c0_10 = arith.constant 0 : index
    %c0_11 = arith.constant 0 : index
    %55 = vector.load %arg5[%c0_10, %c0_11] : memref<8x128xf32, #tpu.memory_space<vmem>>, vector<8x128xf32>
    tpu.vector_store %arg5[%c0_10, %c0_11], %54 {strides = array<i32>} : memref<8x128xf32, #tpu.memory_space<vmem>>, vector<8x128xf32>,
    return
  }
  func.func @transform_0(%arg0: i32) -> (i32, i32) {
    %c0_i32 = arith.constant 0 : i32
    %c0_i32_0 = arith.constant 0 : i32
    return %arg0, %c0_i32 : i32, i32
  }
  func.func @transform_1(%arg0: i32) -> (i32, i32) {
    %c0_i32 = arith.constant 0 : i32
    %c0_i32_0 = arith.constant 0 : i32
    %c0_i32_1 = arith.constant 0 : i32
    return %c0_i32, %c0_i32_0 : i32, i32
  }
  func.func @transform_2(%arg0: i32) -> (i32, i32) {
    %c0_i32 = arith.constant 0 : i32
    %c0_i32_0 = arith.constant 0 : i32
    %c0_i32_1 = arith.constant 0 : i32
    return %c0_i32, %c0_i32_0 : i32, i32
  }
  func.func @transform_3(%arg0: i32) -> (i32, i32) {
    %c0_i32 = arith.constant 0 : i32
    %c0_i32_0 = arith.constant 0 : i32
    %c0_i32_1 = arith.constant 0 : i32
    return %c0_i32, %c0_i32_0 : i32, i32
  }
  func.func @transform_4(%arg0: i32) -> (i32, i32) {
    %c0_i32 = arith.constant 0 : i32
    %c0_i32_0 = arith.constant 0 : i32
    return %arg0, %c0_i32 : i32, i32
  }
}

</mosaic_0001>

<llo_original>
// kernel: textcnn_forward.1
$region0: #{textcnn_forward.1}
  #allocation0 [shape = 'u32[]', space=smem, size = 0x4, offset = 0x4, fixed_abs, tag = 'smem constant byte address 0x4 - core index']
  #allocation1 [shape = 'u32[144,128]{1,0:T(1,128)}', space=vmem, size = 0x12000, scoped, tag = 'internal scratch']
  %s0 = inlined_call_operand.vmem [shape: s32[160,1], index: 0, kind: input, shape index: {}]
  %s1 = inlined_call_operand.vmem [shape: bf16[640,128], index: 1, kind: input, shape index: {}]
  %s2 = inlined_call_operand.vmem [shape: f32[8,128], index: 2, kind: input, shape index: {}]
  %s3 = inlined_call_operand.hbm [shape: bf16[128,128], index: 3, kind: input, shape index: {}]
  %s4 = inlined_call_operand.vmem [shape: f32[16,128], index: 4, kind: output, shape index: {}]
  %s5 = sld [smem:[#allocation0]]
  $region53: #{textcnn_forward.1} parent=0
    _
  %s7 = ssub.s32 1, %s5
  %s8 = scalar_select 0, %s7, %s5
  $region1: #{textcnn_forward.1} parent=0
    #allocation2 [shape = 'u8[32768]{0}', space=vmem, size = 0x8000, scoped, tag = 'input window, operand 3, single buffered']
    #allocation3 [shape = 's32[2]{0}', space=sflag, size = 0x8, scoped, tag = 'scoped memory for textcnn_forward.1']
    %9 = vsyncpa [#allocation3], 0
    loop: start=0, step=1, limit=4
    $region2: #{textcnn_forward.1} parent=1 // loop_pre_header
      _
    $region3: #{textcnn_forward.1} parent=1 // loop_header
      %s11 = sphi 0, %s15
      %p12 = scmp.ge.s32.totalorder %s11, 4
      %s21 = sphi 0, %s23
      %s24 = sphi 0, %s21
      %s25 = sphi 0, %s24
      %s41 = sphi 0, %s25
      %s45 = sphi 0, %s45
      %s47 = sphi 0, %s45
      %s48 = sphi 0, %s47
      %s62 = sphi 0, %s48
      %s66 = sphi 0, %s66
      %s68 = sphi 0, %s66
      %s69 = sphi 0, %s68
      %s83 = sphi 0, %s69
      %s87 = sphi 0, %s87
      %s89 = sphi 0, %s87
      %s90 = sphi 0, %s89
      %s104 = sphi 0, %s90
      %s110 = sphi 0, %s112
      %s113 = sphi 0, %s110
      %s114 = sphi 0, %s113
      %s130 = sphi 0, %s114
    $region4: #{textcnn_forward.1} parent=1 // loop_header_branch
      %14 = sbr.rel (%p12) target = $region8
    $region5: #{textcnn_forward.1} parent=1 // loop_body
      %s16 = ssub.s32 %s11, 1
      %s17 = ssub.s32 %s11, 2
      %s18 = sadd.s32 %s11, 1
      %s19 = ssub.s32 %s11, %s18
      %p20 = scmp.eq.s32.totalorder %s19, 0
      %s22 = sadd.s32 %s21, 1
      %s23 = scalar_select %p20, %s21, %s22
      %p26 = pneg %p20
      %p27 = scmp.eq.s32.totalorder %s11, 1
      %p28 = por %p26, %p27
      %p29 = scmp.ne.s32.totalorder %s21, %s24
      %p30 = scmp.eq.s32.totalorder %s11, 0
      %p31 = por %p29, %p30
      %p32 = scmp.ne.s32.totalorder %s21, %s24
      %p33 = scmp.eq.s32.totalorder %s16, 1
      %p34 = por %p32, %p33
      %p35 = scmp.ne.s32.totalorder %s24, %s25
      %p36 = scmp.eq.s32.totalorder %s16, 0
      %p37 = por %p35, %p36
      %p38 = scmp.ne.s32.totalorder %s24, %s25
      %p39 = scmp.eq.s32.totalorder %s17, 1
      %p40 = por %p38, %p39
      %p42 = scmp.ne.s32.totalorder %s25, %s41
      %p43 = scmp.eq.s32.totalorder %s17, 0
      %p44 = por %p42, %p43
      %s46 = sadd.s32 %s45, 1
      %p49 = scmp.eq.s32.totalorder %s11, 1
      %p50 = scmp.ne.s32.totalorder %s45, %s47
      %p51 = scmp.eq.s32.totalorder %s11, 0
      %p52 = por %p50, %p51
      %p53 = scmp.ne.s32.totalorder %s45, %s47
      %p54 = scmp.eq.s32.totalorder %s16, 1
      %p55 = por %p53, %p54
      %p56 = scmp.ne.s32.totalorder %s47, %s48
      %p57 = scmp.eq.s32.totalorder %s16, 0
      %p58 = por %p56, %p57
      %p59 = scmp.ne.s32.totalorder %s47, %s48
      %p60 = scmp.eq.s32.totalorder %s17, 1
      %p61 = por %p59, %p60
      %p63 = scmp.ne.s32.totalorder %s48, %s62
      %p64 = scmp.eq.s32.totalorder %s17, 0
      %p65 = por %p63, %p64
      %s67 = sadd.s32 %s66, 1
      %p70 = scmp.eq.s32.totalorder %s11, 1
      %p71 = scmp.ne.s32.totalorder %s66, %s68
      %p72 = scmp.eq.s32.totalorder %s11, 0
      %p73 = por %p71, %p72
      %p74 = scmp.ne.s32.totalorder %s66, %s68
      %p75 = scmp.eq.s32.totalorder %s16, 1
      %p76 = por %p74, %p75
      %p77 = scmp.ne.s32.totalorder %s68, %s69
      %p78 = scmp.eq.s32.totalorder %s16, 0
      %p79 = por %p77, %p78
      %p80 = scmp.ne.s32.totalorder %s68, %s69
      %p81 = scmp.eq.s32.totalorder %s17, 1
      %p82 = por %p80, %p81
      %p84 = scmp.ne.s32.totalorder %s69, %s83
      %p85 = scmp.eq.s32.totalorder %s17, 0
      %p86 = por %p84, %p85
      %s88 = sadd.s32 %s87, 1
      %p91 = scmp.eq.s32.totalorder %s11, 1
      %p92 = scmp.ne.s32.totalorder %s87, %s89
      %p93 = scmp.eq.s32.totalorder %s11, 0
      %p94 = por %p92, %p93
      %p95 = scmp.ne.s32.totalorder %s87, %s89
      %p96 = scmp.eq.s32.totalorder %s16, 1
      %p97 = por %p95, %p96
      %p98 = scmp.ne.s32.totalorder %s89, %s90
      %p99 = scmp.eq.s32.totalorder %s16, 0
      %p100 = por %p98, %p99
      %p101 = scmp.ne.s32.totalorder %s89, %s90
      %p102 = scmp.eq.s32.totalorder %s17, 1
      %p103 = por %p101, %p102
      %p105 = scmp.ne.s32.totalorder %s90, %s104
      %p106 = scmp.eq.s32.totalorder %s17, 0
      %p107 = por %p105, %p106
      %s108 = ssub.s32 %s11, %s18
      %p109 = scmp.eq.s32.totalorder %s108, 0
      %s111 = sadd.s32 %s110, 1
      %s112 = scalar_select %p109, %s110, %s111
      %p115 = pneg %p109
      %p116 = scmp.eq.s32.totalorder %s11, 1
      %p117 = por %p115, %p116
      %p118 = scmp.ne.s32.totalorder %s110, %s113
      %p119 = scmp.eq.s32.totalorder %s11, 0
      %p120 = por %p118, %p119
      %p121 = scmp.ne.s32.totalorder %s110, %s113
      %p122 = scmp.eq.s32.totalorder %s16, 1
      %p123 = por %p121, %p122
      %p124 = scmp.ne.s32.totalorder %s113, %s114
      %p125 = scmp.eq.s32.totalorder %s16, 0
      %p126 = por %p124, %p125
      %p127 = scmp.ne.s32.totalorder %s113, %s114
      %p128 = scmp.eq.s32.totalorder %s17, 1
      %p129 = por %p127, %p128
      %p131 = scmp.ne.s32.totalorder %s114, %s130
      %p132 = scmp.eq.s32.totalorder %s17, 0
      %p133 = por %p131, %p132
      %p134 = scmp.le.s32.totalorder 1, %s11
      %p135 = scmp.lt.s32.totalorder %s11, 3
      %p136 = pnand %p134, %p135
      %p137 = pneg %p136
      // Predicated region
      $region9: #{textcnn_forward.1} parent=5 // pred_check
        _
      $region10: #{textcnn_forward.1} parent=5 // pred_check_branch
        %139 = sbr.rel (%p136) target = $region12
      $region11: #{textcnn_forward.1} parent=5 // pred_region
        %s140 = ssub.s32 %s11, 1
        // Predicated region
        $region13: #{textcnn_forward.1} parent=11 // pred_check
          %p141 = pneg %p58
        $region14: #{textcnn_forward.1} parent=11 // pred_check_branch
          %143 = sbr.rel (%p141) target = $region16
        $region15: #{textcnn_forward.1} parent=11 // pred_region
          _
        $region16: #{textcnn_forward.1} parent=11 // pred_fallthru
          _
        // Predicated region
        $region17: #{textcnn_forward.1} parent=11 // pred_check
          %p144 = pneg %p79
        $region18: #{textcnn_forward.1} parent=11 // pred_check_branch
          %146 = sbr.rel (%p144) target = $region20
        $region19: #{textcnn_forward.1} parent=11 // pred_region
          _
        $region20: #{textcnn_forward.1} parent=11 // pred_fallthru
          _
        // Predicated region
        $region21: #{textcnn_forward.1} parent=11 // pred_check
          %p147 = pneg %p100
        $region22: #{textcnn_forward.1} parent=11 // pred_check_branch
          %149 = sbr.rel (%p147) target = $region24
        $region23: #{textcnn_forward.1} parent=11 // pred_region
          %s151 = ssub.s32 1024, 1024
          %152 = vsyncadd [#allocation3], %s151
          %s153 = sshll.u32 [#allocation2], 4
          %s154 = int_to_ptr.vmem [resolvable:$true] %s153
          %159 = dma.hbm_to_vmem [thread:$0]  %s3, 1024, %s154, [#allocation3], 64, 64, 4
        $region24: #{textcnn_forward.1} parent=11 // pred_fallthru
          _
      $region12: #{textcnn_forward.1} parent=5 // pred_fallthru
        _
      %p160 = scmp.lt.s32.totalorder %s11, 2
      // Predicated region
      $region25: #{textcnn_forward.1} parent=5 // pred_check
        %p161 = pneg %p160
      $region26: #{textcnn_forward.1} parent=5 // pred_check_branch
        %163 = sbr.rel (%p161) target = $region28
      $region27: #{textcnn_forward.1} parent=5 // pred_region
        // Predicated region
        $region29: #{textcnn_forward.1} parent=27 // pred_check
          %p164 = pneg %p31
        $region30: #{textcnn_forward.1} parent=27 // pred_check_branch
          %166 = sbr.rel (%p164) target = $region32
        $region31: #{textcnn_forward.1} parent=27 // pred_region
          %s167 = smul.u32 10, %s11
          %p168 = scmp.lt.s32.totalorder %s167, 19
          %s169 = scalar_select %p168, %s167, 19
          %s170 = smul.addr %s169, 8
          %s171 = scalar_lea.vmem %s0, %s170
          %s172 = smul.u32 10, %s11
        $region32: #{textcnn_forward.1} parent=27 // pred_fallthru
          _
      $region28: #{textcnn_forward.1} parent=5 // pred_fallthru
        _
      %p173 = scmp.le.s32.totalorder 1, %s11
      %p174 = scmp.lt.s32.totalorder %s11, 3
      %p175 = pnand %p173, %p174
      %p176 = pneg %p175
      // Predicated region
      $region33: #{textcnn_forward.1} parent=5 // pred_check
        _
      $region34: #{textcnn_forward.1} parent=5 // pred_check_branch
        %178 = sbr.rel (%p175) target = $region36
      $region35: #{textcnn_forward.1} parent=5 // pred_region
        %s179 = ssub.s32 %s11, 1
        // Predicated region
        $region37: #{textcnn_forward.1} parent=35 // pred_check
          %p180 = pneg %p100
        $region38: #{textcnn_forward.1} parent=35 // pred_check_branch
          %182 = sbr.rel (%p180) target = $region40
        $region39: #{textcnn_forward.1} parent=35 // pred_region
          %183 = dma.done [#allocation3], 1024
        $region40: #{textcnn_forward.1} parent=35 // pred_fallthru
          _
        %s184 = smul.u32 10, %s16
        %p185 = scmp.lt.s32.totalorder %s184, 19
        %s186 = scalar_select %p185, %s184, 19
        %s187 = smul.addr %s186, 8
        %s188 = scalar_lea.vmem %s0, %s187
        %p189 = pneg %p37
        %p190 = pneg %p34
        %p191 = pneg %p58
        %p192 = pneg %p55
        %p193 = pneg %p79
        %p194 = pneg %p76
        %p195 = pneg %p100
        %p196 = pneg %p97
        %p197 = pneg %p126
        %p198 = pneg %p123
        %p199 = scmp.lt.s32.totalorder %s16, 1
        %s200 = scalar_select %p199, %s16, 1
        %s201 = smul.addr %s200, 8
        %s202 = scalar_lea.vmem %s4, %s201
        %s203 = smul.u32 10, %s16
        %p204 = scmp.lt.s32.totalorder %s203, 19
        %s205 = scalar_select %p204, %s203, 19
        %s206 = smul.addr %s205, 8
        %s207 = scalar_lea.vmem %s0, %s206
        %s208 = smul.u32 10, %s16
        %p209 = scmp.lt.s32.totalorder %s16, 1
        %s210 = scalar_select %p209, %s16, 1
        %s211 = smul.addr %s210, 8
        %s212 = scalar_lea.vmem %s4, %s211
        %v214 = vld [vmem:[%s207] sm:$0xff]
        %v215 = vld [vmem:[%s207 + $0x8] sm:$0xff]
        %v216 = vld [vmem:[%s207 + $0x10] sm:$0xff]
        %v217 = vld [vmem:[%s207 + $0x18] sm:$0xff]
        %v218 = vld [vmem:[%s207 + $0x20] sm:$0xff]
        %v219 = vld [vmem:[%s207 + $0x28] sm:$0xff]
        %v220 = vld [vmem:[%s207 + $0x30] sm:$0xff]
        %v221 = vld [vmem:[%s207 + $0x38] sm:$0xff]
        %v222 = vld [vmem:[%s207 + $0x40] sm:$0xff]
        %v223 = vld [vmem:[%s207 + $0x48] sm:$0xff]
        %v224 = vlaneseq
        %v225 = vand.u32 %v224, 127
        %226 = vset.pattern.permute.xlu0 0
        %227 = vperm.xlu0 %226, %v214
        %v228 = vpop.permute.xlu0 %227
        %229 = vset.pattern.permute.xlu0 0
        %230 = vperm.xlu0 %229, %v215
        %v231 = vpop.permute.xlu0 %230
        %232 = vset.pattern.permute.xlu0 0
        %233 = vperm.xlu0 %232, %v216
        %v234 = vpop.permute.xlu0 %233
        %235 = vset.pattern.permute.xlu0 0
        %236 = vperm.xlu0 %235, %v217
        %v237 = vpop.permute.xlu0 %236
        %238 = vset.pattern.permute.xlu0 0
        %239 = vperm.xlu0 %238, %v218
        %v240 = vpop.permute.xlu0 %239
        %241 = vset.pattern.permute.xlu0 0
        %242 = vperm.xlu0 %241, %v219
        %v243 = vpop.permute.xlu0 %242
        %244 = vset.pattern.permute.xlu0 0
        %245 = vperm.xlu0 %244, %v220
        %v246 = vpop.permute.xlu0 %245
        %247 = vset.pattern.permute.xlu0 0
        %248 = vperm.xlu0 %247, %v221
        %v249 = vpop.permute.xlu0 %248
        %250 = vset.pattern.permute.xlu0 0
        %251 = vperm.xlu0 %250, %v222
        %v252 = vpop.permute.xlu0 %251
        %253 = vset.pattern.permute.xlu0 0
        %254 = vperm.xlu0 %253, %v223
        %v255 = vpop.permute.xlu0 %254
        %vm256 = vcmp.eq.s32.totalorder %v228, %v225
        %vm257 = vcmp.eq.s32.totalorder %v231, %v225
        %vm258 = vcmp.eq.s32.totalorder %v234, %v225
        %vm259 = vcmp.eq.s32.totalorder %v237, %v225
        %vm260 = vcmp.eq.s32.totalorder %v240, %v225
        %vm261 = vcmp.eq.s32.totalorder %v243, %v225
        %vm262 = vcmp.eq.s32.totalorder %v246, %v225
        %vm263 = vcmp.eq.s32.totalorder %v249, %v225
        %vm264 = vcmp.eq.s32.totalorder %v252, %v225
        %vm265 = vcmp.eq.s32.totalorder %v255, %v225
        %v266 = vsel %vm256, 1, 0
        %v267 = vsel %vm257, 1, 0
        %v268 = vsel %vm258, 1, 0
        %v269 = vsel %vm259, 1, 0
        %v270 = vsel %vm260, 1, 0
        %v271 = vsel %vm261, 1, 0
        %v272 = vsel %vm262, 1, 0
        %v273 = vsel %vm263, 1, 0
        %v274 = vsel %vm264, 1, 0
        %v275 = vsel %vm265, 1, 0
        %v276 = vcvt.s32.f32 %v266
        %v277 = vcvt.s32.f32 %v267
        %v278 = vcvt.s32.f32 %v268
        %v279 = vcvt.s32.f32 %v269
        %v280 = vcvt.s32.f32 %v270
        %v281 = vcvt.s32.f32 %v271
        %v282 = vcvt.s32.f32 %v272
        %v283 = vcvt.s32.f32 %v273
        %v284 = vcvt.s32.f32 %v274
        %v285 = vcvt.s32.f32 %v275
        %v286 = vpack.c.bf16 %v277, %v276
        %v287 = vpack.c.bf16 %v279, %v278
        %v288 = vpack.c.bf16 %v281, %v280
        %v289 = vpack.c.bf16 %v283, %v282
        %v290 = vpack.c.bf16 %v285, %v284
        %vm295 = vcmask 1043456
        %v296 = vrot.slane %v286, 4
        %v297 = vrot.slane %v287, 4
        %v298 = vsel %vm295, %v296, %v297
        %v299 = vrot.slane %v288, 4
        %v300 = vsel %vm295, %v297, %v299
        %v301 = vrot.slane %v289, 4
        %v302 = vsel %vm295, %v299, %v301
        %v307 = vrot.slane %v290, 4
        %v308 = vsel %vm295, %v301, %v307
        %v310 = vld [vmem:[%s1] sm:$0xf]
        %v311 = vld [vmem:[%s1 + $0x4] sm:$0xf]
        %v312 = vld [vmem:[%s1 + $0x8] sm:$0xf]
        %v313 = vld [vmem:[%s1 + $0xc] sm:$0xf]
        %v314 = vld [vmem:[%s1 + $0x10] sm:$0xf]
        %v315 = vld [vmem:[%s1 + $0x14] sm:$0xf]
        %v316 = vld [vmem:[%s1 + $0x18] sm:$0xf]
        %v317 = vld [vmem:[%s1 + $0x1c] sm:$0xf]
        %v318 = vld [vmem:[%s1 + $0x20] sm:$0xf]
        %v319 = vld [vmem:[%s1 + $0x24] sm:$0xf]
        %v320 = vld [vmem:[%s1 + $0x28] sm:$0xf]
        %v321 = vld [vmem:[%s1 + $0x2c] sm:$0xf]
        %v322 = vld [vmem:[%s1 + $0x30] sm:$0xf]
        %v323 = vld [vmem:[%s1 + $0x34] sm:$0xf]
        %v324 = vld [vmem:[%s1 + $0x38] sm:$0xf]
        %v325 = vld [vmem:[%s1 + $0x3c] sm:$0xf]
        %v326 = vld [vmem:[%s1 + $0x40] sm:$0xf]
        %v327 = vld [vmem:[%s1 + $0x44] sm:$0xf]
        %v328 = vld [vmem:[%s1 + $0x48] sm:$0xf]
        %v329 = vld [vmem:[%s1 + $0x4c] sm:$0xf]
        %v330 = vld [vmem:[%s1 + $0x50] sm:$0xf]
        %v331 = vld [vmem:[%s1 + $0x54] sm:$0xf]
        %v332 = vld [vmem:[%s1 + $0x58] sm:$0xf]
        %v333 = vld [vmem:[%s1 + $0x5c] sm:$0xf]
        %v334 = vld [vmem:[%s1 + $0x60] sm:$0xf]
        %v335 = vld [vmem:[%s1 + $0x64] sm:$0xf]
        %v336 = vld [vmem:[%s1 + $0x68] sm:$0xf]
        %v337 = vld [vmem:[%s1 + $0x6c] sm:$0xf]
        %v338 = vld [vmem:[%s1 + $0x70] sm:$0xf]
        %v339 = vld [vmem:[%s1 + $0x74] sm:$0xf]
        %v340 = vld [vmem:[%s1 + $0x78] sm:$0xf]
        %v341 = vld [vmem:[%s1 + $0x7c] sm:$0xf]
        %v342 = vld [vmem:[%s1 + $0x80] sm:$0xf]
        %v343 = vld [vmem:[%s1 + $0x84] sm:$0xf]
        %v344 = vld [vmem:[%s1 + $0x88] sm:$0xf]
        %v345 = vld [vmem:[%s1 + $0x8c] sm:$0xf]
        %v346 = vld [vmem:[%s1 + $0x90] sm:$0xf]
        %v347 = vld [vmem:[%s1 + $0x94] sm:$0xf]
        %v348 = vld [vmem:[%s1 + $0x98] sm:$0xf]
        %v349 = vld [vmem:[%s1 + $0x9c] sm:$0xf]
        %v350 = vld [vmem:[%s1 + $0xa0] sm:$0xf]
        %v351 = vld [vmem:[%s1 + $0xa4] sm:$0xf]
        %v352 = vld [vmem:[%s1 + $0xa8] sm:$0xf]
        %v353 = vld [vmem:[%s1 + $0xac] sm:$0xf]
        %v354 = vld [vmem:[%s1 + $0xb0] sm:$0xf]
        %v355 = vld [vmem:[%s1 + $0xb4] sm:$0xf]
        %v356 = vld [vmem:[%s1 + $0xb8] sm:$0xf]
        %v357 = vld [vmem:[%s1 + $0xbc] sm:$0xf]
        %v358 = vld [vmem:[%s1 + $0xc0] sm:$0xf]
        %v359 = vld [vmem:[%s1 + $0xc4] sm:$0xf]
        %v360 = vld [vmem:[%s1 + $0xc8] sm:$0xf]
        %v361 = vld [vmem:[%s1 + $0xcc] sm:$0xf]
        %v362 = vld [vmem:[%s1 + $0xd0] sm:$0xf]
        %v363 = vld [vmem:[%s1 + $0xd4] sm:$0xf]
        %v364 = vld [vmem:[%s1 + $0xd8] sm:$0xf]
        %v365 = vld [vmem:[%s1 + $0xdc] sm:$0xf]
        %v366 = vld [vmem:[%s1 + $0xe0] sm:$0xf]
        %v367 = vld [vmem:[%s1 + $0xe4] sm:$0xf]
        %v368 = vld [vmem:[%s1 + $0xe8] sm:$0xf]
        %v369 = vld [vmem:[%s1 + $0xec] sm:$0xf]
        %v370 = vld [vmem:[%s1 + $0xf0] sm:$0xf]
        %v371 = vld [vmem:[%s1 + $0xf4] sm:$0xf]
        %v372 = vld [vmem:[%s1 + $0xf8] sm:$0xf]
        %v373 = vld [vmem:[%s1 + $0xfc] sm:$0xf]
        %v374 = vld [vmem:[%s1 + $0x100] sm:$0xf]
        %v375 = vld [vmem:[%s1 + $0x104] sm:$0xf]
        %v376 = vld [vmem:[%s1 + $0x108] sm:$0xf]
        %v377 = vld [vmem:[%s1 + $0x10c] sm:$0xf]
        %v378 = vld [vmem:[%s1 + $0x110] sm:$0xf]
        %v379 = vld [vmem:[%s1 + $0x114] sm:$0xf]
        %v380 = vld [vmem:[%s1 + $0x118] sm:$0xf]
        %v381 = vld [vmem:[%s1 + $0x11c] sm:$0xf]
        %v382 = vld [vmem:[%s1 + $0x120] sm:$0xf]
        %v383 = vld [vmem:[%s1 + $0x124] sm:$0xf]
        %v384 = vld [vmem:[%s1 + $0x128] sm:$0xf]
        %v385 = vld [vmem:[%s1 + $0x12c] sm:$0xf]
        %v386 = vld [vmem:[%s1 + $0x130] sm:$0xf]
        %v387 = vld [vmem:[%s1 + $0x134] sm:$0xf]
        %v388 = vld [vmem:[%s1 + $0x138] sm:$0xf]
        %v389 = vld [vmem:[%s1 + $0x13c] sm:$0xf]
        %v470 = vunpack.c.l.b16 %v310
        %v471 = vunpack.c.l.b16 %v311
        %v472 = vunpack.c.l.b16 %v312
        %v473 = vunpack.c.l.b16 %v313
        %v474 = vunpack.c.l.b16 %v314
        %v475 = vunpack.c.l.b16 %v315
        %v476 = vunpack.c.l.b16 %v316
        %v477 = vunpack.c.l.b16 %v317
        %v478 = vunpack.c.l.b16 %v318
        %v479 = vunpack.c.l.b16 %v319
        %v480 = vunpack.c.l.b16 %v320
        %v481 = vunpack.c.l.b16 %v321
        %v482 = vunpack.c.l.b16 %v322
        %v483 = vunpack.c.l.b16 %v323
        %v484 = vunpack.c.l.b16 %v324
        %v485 = vunpack.c.l.b16 %v325
        %v486 = vunpack.c.l.b16 %v326
        %v487 = vunpack.c.l.b16 %v327
        %v488 = vunpack.c.l.b16 %v328
        %v489 = vunpack.c.l.b16 %v329
        %v490 = vunpack.c.l.b16 %v330
        %v491 = vunpack.c.l.b16 %v331
        %v492 = vunpack.c.l.b16 %v332
        %v493 = vunpack.c.l.b16 %v333
        %v494 = vunpack.c.l.b16 %v334
        %v495 = vunpack.c.l.b16 %v335
        %v496 = vunpack.c.l.b16 %v336
        %v497 = vunpack.c.l.b16 %v337
        %v498 = vunpack.c.l.b16 %v338
        %v499 = vunpack.c.l.b16 %v339
        %v500 = vunpack.c.l.b16 %v340
        %v501 = vunpack.c.l.b16 %v341
        %v502 = vunpack.c.l.b16 %v342
        %v503 = vunpack.c.l.b16 %v343
        %v504 = vunpack.c.l.b16 %v344
        %v505 = vunpack.c.l.b16 %v345
        %v506 = vunpack.c.l.b16 %v346
        %v507 = vunpack.c.l.b16 %v347
        %v508 = vunpack.c.l.b16 %v348
        %v509 = vunpack.c.l.b16 %v349
        %v510 = vunpack.c.l.b16 %v350
        %v511 = vunpack.c.l.b16 %v351
        %v512 = vunpack.c.l.b16 %v352
        %v513 = vunpack.c.l.b16 %v353
        %v514 = vunpack.c.l.b16 %v354
        %v515 = vunpack.c.l.b16 %v355
        %v516 = vunpack.c.l.b16 %v356
        %v517 = vunpack.c.l.b16 %v357
        %v518 = vunpack.c.l.b16 %v358
        %v519 = vunpack.c.l.b16 %v359
        %v520 = vunpack.c.l.b16 %v360
        %v521 = vunpack.c.l.b16 %v361
        %v522 = vunpack.c.l.b16 %v362
        %v523 = vunpack.c.l.b16 %v363
        %v524 = vunpack.c.l.b16 %v364
        %v525 = vunpack.c.l.b16 %v365
        %v526 = vunpack.c.l.b16 %v366
        %v527 = vunpack.c.l.b16 %v367
        %v528 = vunpack.c.l.b16 %v368
        %v529 = vunpack.c.l.b16 %v369
        %v530 = vunpack.c.l.b16 %v370
        %v531 = vunpack.c.l.b16 %v371
        %v532 = vunpack.c.l.b16 %v372
        %v533 = vunpack.c.l.b16 %v373
        %v534 = vunpack.c.l.b16 %v374
        %v535 = vunpack.c.l.b16 %v375
        %v536 = vunpack.c.l.b16 %v376
        %v537 = vunpack.c.l.b16 %v377
        %v538 = vunpack.c.l.b16 %v378
        %v539 = vunpack.c.l.b16 %v379
        %v540 = vunpack.c.l.b16 %v380
        %v541 = vunpack.c.l.b16 %v381
        %v542 = vunpack.c.l.b16 %v382
        %v543 = vunpack.c.l.b16 %v383
        %v544 = vunpack.c.l.b16 %v384
        %v545 = vunpack.c.l.b16 %v385
        %v546 = vunpack.c.l.b16 %v386
        %v547 = vunpack.c.l.b16 %v387
        %v548 = vunpack.c.l.b16 %v388
        %v549 = vunpack.c.l.b16 %v389
        %v550 = vpack.c.b16 %v471, %v470
        %v551 = vpack.c.b16 %v473, %v472
        %v552 = vpack.c.b16 %v475, %v474
        %v553 = vpack.c.b16 %v477, %v476
        %v554 = vpack.c.b16 %v479, %v478
        %v555 = vpack.c.b16 %v481, %v480
        %v556 = vpack.c.b16 %v483, %v482
        %v557 = vpack.c.b16 %v485, %v484
        %v558 = vpack.c.b16 %v487, %v486
        %v559 = vpack.c.b16 %v489, %v488
        %v560 = vpack.c.b16 %v491, %v490
        %v561 = vpack.c.b16 %v493, %v492
        %v562 = vpack.c.b16 %v495, %v494
        %v563 = vpack.c.b16 %v497, %v496
        %v564 = vpack.c.b16 %v499, %v498
        %v565 = vpack.c.b16 %v501, %v500
        %v566 = vpack.c.b16 %v503, %v502
        %v567 = vpack.c.b16 %v505, %v504
        %v568 = vpack.c.b16 %v507, %v506
        %v569 = vpack.c.b16 %v509, %v508
        %v570 = vpack.c.b16 %v511, %v510
        %v571 = vpack.c.b16 %v513, %v512
        %v572 = vpack.c.b16 %v515, %v514
        %v573 = vpack.c.b16 %v517, %v516
        %v574 = vpack.c.b16 %v519, %v518
        %v575 = vpack.c.b16 %v521, %v520
        %v576 = vpack.c.b16 %v523, %v522
        %v577 = vpack.c.b16 %v525, %v524
        %v578 = vpack.c.b16 %v527, %v526
        %v579 = vpack.c.b16 %v529, %v528
        %v580 = vpack.c.b16 %v531, %v530
        %v581 = vpack.c.b16 %v533, %v532
        %v582 = vpack.c.b16 %v535, %v534
        %v583 = vpack.c.b16 %v537, %v536
        %v584 = vpack.c.b16 %v539, %v538
        %v585 = vpack.c.b16 %v541, %v540
        %v586 = vpack.c.b16 %v543, %v542
        %v587 = vpack.c.b16 %v545, %v544
        %v588 = vpack.c.b16 %v547, %v546
        %v589 = vpack.c.b16 %v549, %v548
        %630 = vmatprep.subr.bf16.mxu0 0
        %631 = vmatpush1.bf16.msra.mxu0 %v550
        %632 = vmatprep.subr.bf16.mxu0 0
        %633 = vmatpush1.bf16.msra.mxu0 %v551
        %634 = vmatprep.subr.bf16.mxu0 0
        %635 = vmatpush1.bf16.msra.mxu0 %v552
        %636 = vmatprep.subr.bf16.mxu0 0
        %637 = vmatpush1.bf16.msra.mxu0 %v553
        %638 = vmatprep.subr.bf16.mxu0 0
        %639 = vmatpush1.bf16.msra.mxu0 %v554
        %640 = vmatprep.subr.bf16.mxu0 0
        %641 = vmatpush1.bf16.msra.mxu0 %v555
        %642 = vmatprep.subr.bf16.mxu0 0
        %643 = vmatpush1.bf16.msra.mxu0 %v556
        %644 = vmatprep.subr.bf16.mxu0 0
        %645 = vmatpush1.bf16.msra.mxu0 %v557
        %646 = vmatprep.subr.bf16.mxu0 0
        %647 = vmatpush1.bf16.msra.mxu0 %v558
        %648 = vmatprep.subr.bf16.mxu0 0
        %649 = vmatpush1.bf16.msra.mxu0 %v559
        %650 = vmatprep.subr.bf16.mxu0 0
        %651 = vmatpush1.bf16.msra.mxu0 %v560
        %652 = vmatprep.subr.bf16.mxu0 0
        %653 = vmatpush1.bf16.msra.mxu0 %v561
        %654 = vmatprep.subr.bf16.mxu0 0
        %655 = vmatpush1.bf16.msra.mxu0 %v562
        %656 = vmatprep.subr.bf16.mxu0 0
        %657 = vmatpush1.bf16.msra.mxu0 %v563
        %658 = vmatprep.subr.bf16.mxu0 0
        %659 = vmatpush1.bf16.msra.mxu0 %v564
        %660 = vmatprep.subr.bf16.mxu0 0
        %661 = vmatpush1.bf16.msra.mxu0 %v565
        %662 = vmatprep.mubr.bf16.mxu0 %v298
        %663 = vmatmul.mubr.bf16.gmra.mrb[0].mxu0 %v286
        %v664 = vpop.f32.mrb[0].mxu0
        %v665 = vadd.f32 0.0, %v664
        %v666 = vpop.f32.mrb[0].mxu0
        %v667 = vpop.f32.mrb[0].mxu0
        %v668 = vadd.f32 0.0, %v667
        %v669 = vpop.f32.mrb[0].mxu0
        %670 = vmatprep.mubr.bf16.mxu0 %v300
        %671 = vmatmul.mubr.bf16.gmra.mrb[0].mxu0 %v287
        %v672 = vpop.f32.mrb[0].mxu0
        %v673 = vadd.f32 0.0, %v672
        %v674 = vpop.f32.mrb[0].mxu0
        %v675 = vpop.f32.mrb[0].mxu0
        %v676 = vadd.f32 0.0, %v675
        %v677 = vpop.f32.mrb[0].mxu0
        %678 = vmatprep.mubr.bf16.mxu0 %v302
        %679 = vmatmul.mubr.bf16.gmra.mrb[0].mxu0 %v288
        %v680 = vpop.f32.mrb[0].mxu0
        %v681 = vadd.f32 0.0, %v680
        %v682 = vpop.f32.mrb[0].mxu0
        %v683 = vpop.f32.mrb[0].mxu0
        %v684 = vadd.f32 0.0, %v683
        %v685 = vpop.f32.mrb[0].mxu0
        %686 = vdwg.mxu0
        %687 = vmatprep.subr.bf16.mxu0 0
        %688 = vmatpush1.bf16.msra.mxu0 %v566
        %689 = vmatprep.subr.bf16.mxu0 0
        %690 = vmatpush1.bf16.msra.mxu0 %v567
        %691 = vmatprep.subr.bf16.mxu0 0
        %692 = vmatpush1.bf16.msra.mxu0 %v568
        %693 = vmatprep.subr.bf16.mxu0 0
        %694 = vmatpush1.bf16.msra.mxu0 %v569
        %695 = vmatprep.subr.bf16.mxu0 0
        %696 = vmatpush1.bf16.msra.mxu0 %v570
        %697 = vmatprep.subr.bf16.mxu0 0
        %698 = vmatpush1.bf16.msra.mxu0 %v571
        %699 = vmatprep.subr.bf16.mxu0 0
        %700 = vmatpush1.bf16.msra.mxu0 %v572
        %701 = vmatprep.subr.bf16.mxu0 0
        %702 = vmatpush1.bf16.msra.mxu0 %v573
        %703 = vmatprep.subr.bf16.mxu0 0
        %704 = vmatpush1.bf16.msra.mxu0 %v574
        %705 = vmatprep.subr.bf16.mxu0 0
        %706 = vmatpush1.bf16.msra.mxu0 %v575
        %707 = vmatprep.subr.bf16.mxu0 0
        %708 = vmatpush1.bf16.msra.mxu0 %v576
        %709 = vmatprep.subr.bf16.mxu0 0
        %710 = vmatpush1.bf16.msra.mxu0 %v577
        %711 = vmatprep.subr.bf16.mxu0 0
        %712 = vmatpush1.bf16.msra.mxu0 %v578
        %713 = vmatprep.subr.bf16.mxu0 0
        %714 = vmatpush1.bf16.msra.mxu0 %v579
        %715 = vmatprep.subr.bf16.mxu0 0
        %716 = vmatpush1.bf16.msra.mxu0 %v580
        %717 = vmatprep.subr.bf16.mxu0 0
        %718 = vmatpush1.bf16.msra.mxu0 %v581
        %719 = vmatprep.mubr.bf16.mxu0 %v300
        %720 = vmatmul.mubr.bf16.gmra.mrb[0].mxu0 %v287
        %v721 = vpop.f32.mrb[0].mxu0
        %v722 = vadd.f32 %v665, %v721
        %v723 = vpop.f32.mrb[0].mxu0
        %v724 = vpop.f32.mrb[0].mxu0
        %v725 = vadd.f32 %v668, %v724
        %v726 = vpop.f32.mrb[0].mxu0
        %727 = vmatprep.mubr.bf16.mxu0 %v302
        %728 = vmatmul.mubr.bf16.gmra.mrb[0].mxu0 %v288
        %v729 = vpop.f32.mrb[0].mxu0
        %v730 = vadd.f32 %v673, %v729
        %v731 = vpop.f32.mrb[0].mxu0
        %v732 = vpop.f32.mrb[0].mxu0
        %v733 = vadd.f32 %v676, %v732
        %v734 = vpop.f32.mrb[0].mxu0
        %735 = vmatprep.mubr.bf16.mxu0 %v308
        %736 = vmatmul.mubr.bf16.gmra.mrb[0].mxu0 %v289
        %v737 = vpop.f32.mrb[0].mxu0
        %v738 = vadd.f32 %v681, %v737
        %v739 = vpop.f32.mrb[0].mxu0
        %v740 = vpop.f32.mrb[0].mxu0
        %v741 = vadd.f32 %v684, %v740
        %v742 = vpop.f32.mrb[0].mxu0
        %743 = vdwg.mxu0
        %744 = vmatprep.subr.bf16.mxu0 0
        %745 = vmatpush1.bf16.msra.mxu0 %v582
        %746 = vmatprep.subr.bf16.mxu0 0
        %747 = vmatpush1.bf16.msra.mxu0 %v583
        %748 = vmatprep.subr.bf16.mxu0 0
        %749 = vmatpush1.bf16.msra.mxu0 %v584
        %750 = vmatprep.subr.bf16.mxu0 0
        %751 = vmatpush1.bf16.msra.mxu0 %v585
        %752 = vmatprep.subr.bf16.mxu0 0
        %753 = vmatpush1.bf16.msra.mxu0 %v586
        %754 = vmatprep.subr.bf16.mxu0 0
        %755 = vmatpush1.bf16.msra.mxu0 %v587
        %756 = vmatprep.subr.bf16.mxu0 0
        %757 = vmatpush1.bf16.msra.mxu0 %v588
        %758 = vmatprep.subr.bf16.mxu0 0
        %759 = vmatpush1.bf16.msra.mxu0 %v589
        %760 = vmatprep.subr.bf16.mxu0 0
        %761 = vmatpush1.bf16.msra.mxu0 0
        %762 = vmatprep.subr.bf16.mxu0 0
        %763 = vmatpush1.bf16.msra.mxu0 0
        %764 = vmatprep.subr.bf16.mxu0 0
        %765 = vmatpush1.bf16.msra.mxu0 0
        %766 = vmatprep.subr.bf16.mxu0 0
        %767 = vmatpush1.bf16.msra.mxu0 0
        %768 = vmatprep.subr.bf16.mxu0 0
        %769 = vmatpush1.bf16.msra.mxu0 0
        %770 = vmatprep.subr.bf16.mxu0 0
        %771 = vmatpush1.bf16.msra.mxu0 0
        %772 = vmatprep.subr.bf16.mxu0 0
        %773 = vmatpush1.bf16.msra.mxu0 0
        %774 = vmatprep.subr.bf16.mxu0 0
        %775 = vmatpush1.bf16.msra.mxu0 0
        %776 = vmatprep.mubr.bf16.mxu0 0
        %777 = vmatmul.mubr.bf16.gmra.mrb[0].mxu0 %v288
        %v778 = vpop.f32.mrb[0].mxu0
        %v779 = vadd.f32 %v722, %v778
        %v780 = vpop.f32.mrb[0].mxu0
        %v781 = vpop.f32.mrb[0].mxu0
        %v782 = vadd.f32 %v725, %v781
        %v783 = vpop.f32.mrb[0].mxu0
        %784 = vmatprep.mubr.bf16.mxu0 0
        %785 = vmatmul.mubr.bf16.gmra.mrb[0].mxu0 %v289
        %v786 = vpop.f32.mrb[0].mxu0
        %v787 = vadd.f32 %v730, %v786
        %v788 = vpop.f32.mrb[0].mxu0
        %v789 = vpop.f32.mrb[0].mxu0
        %v790 = vadd.f32 %v733, %v789
        %v791 = vpop.f32.mrb[0].mxu0
        %792 = vmatprep.mubr.bf16.mxu0 0
        %793 = vmatmul.mubr.bf16.gmra.mrb[0].mxu0 %v290
        %v794 = vpop.f32.mrb[0].mxu0
        %v795 = vadd.f32 %v738, %v794
        %v796 = vpop.f32.mrb[0].mxu0
        %v797 = vpop.f32.mrb[0].mxu0
        %v798 = vadd.f32 %v741, %v797
        %v799 = vpop.f32.mrb[0].mxu0
        %800 = vdwg.mxu0
        %v801 = vld [vmem:[%s2] sm:$0xff]
        %v802 = vlaneseq
        %v803 = vshrl.u32 %v802, 7
        %v804 = vsub.s32 0, %v803
        %v805 = vrot.slane %v801, %v804
        %v806 = vadd.f32 %v779, %v805
        %v807 = vlaneseq
        %v808 = vshrl.u32 %v807, 7
        %v809 = vsub.s32 1, %v808
        %v810 = vrot.slane %v801, %v809
        %v811 = vadd.f32 %v782, %v810
        %v812 = vmax.f32 %v806, %v811
        %v813 = vlaneseq
        %v814 = vshrl.u32 %v813, 7
        %v815 = vsub.s32 2, %v814
        %v816 = vrot.slane %v801, %v815
        %v817 = vadd.f32 %v787, %v816
        %v818 = vmax.f32 %v812, %v817
        %v819 = vlaneseq
        %v820 = vshrl.u32 %v819, 7
        %v821 = vsub.s32 3, %v820
        %v822 = vrot.slane %v801, %v821
        %v823 = vadd.f32 %v790, %v822
        %v824 = vmax.f32 %v818, %v823
        %v825 = vlaneseq
        %v826 = vshrl.u32 %v825, 7
        %v827 = vsub.s32 4, %v826
        %v828 = vrot.slane %v801, %v827
        %v829 = vadd.f32 %v795, %v828
        %v830 = vmax.f32 %v824, %v829
        %v831 = vlaneseq
        %v832 = vshrl.u32 %v831, 7
        %v833 = vsub.s32 5, %v832
        %v834 = vrot.slane %v801, %v833
        %v835 = vadd.f32 %v798, %v834
        %v836 = vmax.f32 %v830, %v835
        %v837 = vmax.f32 %v836, 0.0
        %vm838 = vcmp.eq.s32.totalorder %v225, 127
        %v839 = vsel %vm838, 1.0, %v837
        %v840 = vpack.c.bf16 %v839, %v839
        %v841 = vld [vmem:[#allocation2] sm:$0xf]
        %v842 = vld [vmem:[#allocation2 + $0x4] sm:$0xf]
        %v843 = vld [vmem:[#allocation2 + $0x8] sm:$0xf]
        %v844 = vld [vmem:[#allocation2 + $0xc] sm:$0xf]
        %v845 = vld [vmem:[#allocation2 + $0x10] sm:$0xf]
        %v846 = vld [vmem:[#allocation2 + $0x14] sm:$0xf]
        %v847 = vld [vmem:[#allocation2 + $0x18] sm:$0xf]
        %v848 = vld [vmem:[#allocation2 + $0x1c] sm:$0xf]
        %v849 = vld [vmem:[#allocation2 + $0x20] sm:$0xf]
        %v850 = vld [vmem:[#allocation2 + $0x24] sm:$0xf]
        %v851 = vld [vmem:[#allocation2 + $0x28] sm:$0xf]
        %v852 = vld [vmem:[#allocation2 + $0x2c] sm:$0xf]
        %v853 = vld [vmem:[#allocation2 + $0x30] sm:$0xf]
        %v854 = vld [vmem:[#allocation2 + $0x34] sm:$0xf]
        %v855 = vld [vmem:[#allocation2 + $0x38] sm:$0xf]
        %v856 = vld [vmem:[#allocation2 + $0x3c] sm:$0xf]
        %v873 = vunpack.c.l.b16 %v841
        %v874 = vunpack.c.l.b16 %v842
        %v875 = vunpack.c.l.b16 %v843
        %v876 = vunpack.c.l.b16 %v844
        %v877 = vunpack.c.l.b16 %v845
        %v878 = vunpack.c.l.b16 %v846
        %v879 = vunpack.c.l.b16 %v847
        %v880 = vunpack.c.l.b16 %v848
        %v881 = vunpack.c.l.b16 %v849
        %v882 = vunpack.c.l.b16 %v850
        %v883 = vunpack.c.l.b16 %v851
        %v884 = vunpack.c.l.b16 %v852
        %v885 = vunpack.c.l.b16 %v853
        %v886 = vunpack.c.l.b16 %v854
        %v887 = vunpack.c.l.b16 %v855
        %v888 = vunpack.c.l.b16 %v856
        %v889 = vpack.c.b16 %v874, %v873
        %v890 = vpack.c.b16 %v876, %v875
        %v891 = vpack.c.b16 %v878, %v877
        %v892 = vpack.c.b16 %v880, %v879
        %v893 = vpack.c.b16 %v882, %v881
        %v894 = vpack.c.b16 %v884, %v883
        %v895 = vpack.c.b16 %v886, %v885
        %v896 = vpack.c.b16 %v888, %v887
        %905 = vmatprep.subr.bf16.mxu0 0
        %906 = vmatpush1.bf16.msra.mxu0 %v889
        %907 = vmatprep.subr.bf16.mxu0 0
        %908 = vmatpush1.bf16.msra.mxu0 %v890
        %909 = vmatprep.subr.bf16.mxu0 0
        %910 = vmatpush1.bf16.msra.mxu0 %v891
        %911 = vmatprep.subr.bf16.mxu0 0
        %912 = vmatpush1.bf16.msra.mxu0 %v892
        %913 = vmatprep.subr.bf16.mxu0 0
        %914 = vmatpush1.bf16.msra.mxu0 %v893
        %915 = vmatprep.subr.bf16.mxu0 0
        %916 = vmatpush1.bf16.msra.mxu0 %v894
        %917 = vmatprep.subr.bf16.mxu0 0
        %918 = vmatpush1.bf16.msra.mxu0 %v895
        %919 = vmatprep.subr.bf16.mxu0 0
        %920 = vmatpush1.bf16.msra.mxu0 %v896
        %921 = vmatprep.subr.bf16.mxu0 0
        %922 = vmatpush1.bf16.msra.mxu0 0
        %923 = vmatprep.subr.bf16.mxu0 0
        %924 = vmatpush1.bf16.msra.mxu0 0
        %925 = vmatprep.subr.bf16.mxu0 0
        %926 = vmatpush1.bf16.msra.mxu0 0
        %927 = vmatprep.subr.bf16.mxu0 0
        %928 = vmatpush1.bf16.msra.mxu0 0
        %929 = vmatprep.subr.bf16.mxu0 0
        %930 = vmatpush1.bf16.msra.mxu0 0
        %931 = vmatprep.subr.bf16.mxu0 0
        %932 = vmatpush1.bf16.msra.mxu0 0
        %933 = vmatprep.subr.bf16.mxu0 0
        %934 = vmatpush1.bf16.msra.mxu0 0
        %935 = vmatprep.subr.bf16.mxu0 0
        %936 = vmatpush1.bf16.msra.mxu0 0
        %937 = vmatprep.mubr.bf16.mxu0 0
        %938 = vmatmul.mubr.bf16.gmra.mrb[0].mxu0 %v840
        %v939 = vpop.f32.mrb[0].mxu0
        %v940 = vadd.f32 0.0, %v939
        %v941 = vpop.f32.mrb[0].mxu0
        %v942 = vpop.f32.mrb[0].mxu0
        %v943 = vpop.f32.mrb[0].mxu0
        %944 = vdwg.mxu0
        %945 = vst [vmem:[%s212] sm:$0xff] %v940
        %p946 = scmp.lt.s32.totalorder %s16, 1
        %s947 = scalar_select %p946, %s16, 1
        %s948 = smul.addr %s947, 8
        %s949 = scalar_lea.vmem %s4, %s948
        // Predicated region
        $region41: #{textcnn_forward.1} parent=35 // pred_check
          %p950 = pneg %p123
        $region42: #{textcnn_forward.1} parent=35 // pred_check_branch
          %952 = sbr.rel (%p950) target = $region44
        $region43: #{textcnn_forward.1} parent=35 // pred_region
          _
        $region44: #{textcnn_forward.1} parent=35 // pred_fallthru
          _
      $region36: #{textcnn_forward.1} parent=5 // pred_fallthru
        _
      %p953 = scmp.le.s32.totalorder 2, %s11
      // Predicated region
      $region45: #{textcnn_forward.1} parent=5 // pred_check
        %p954 = pneg %p953
      $region46: #{textcnn_forward.1} parent=5 // pred_check_branch
        %956 = sbr.rel (%p954) target = $region48
      $region47: #{textcnn_forward.1} parent=5 // pred_region
        %s957 = ssub.s32 %s11, 2
        // Predicated region
        $region49: #{textcnn_forward.1} parent=47 // pred_check
          %p958 = pneg %p129
        $region50: #{textcnn_forward.1} parent=47 // pred_check_branch
          %960 = sbr.rel (%p958) target = $region52
        $region51: #{textcnn_forward.1} parent=47 // pred_region
          %p961 = scmp.lt.s32.totalorder %s17, 1
          %s962 = scalar_select %p961, %s17, 1
          %s963 = smul.addr %s962, 8
          %s964 = scalar_lea.vmem %s4, %s963
        $region52: #{textcnn_forward.1} parent=47 // pred_fallthru
          _
      $region48: #{textcnn_forward.1} parent=5 // pred_fallthru
        _
    $region6: #{textcnn_forward.1} parent=1 // loop_footer
      %s15 = sadd.s32 1, %s11
    $region7: #{textcnn_forward.1} parent=1 // loop_footer_branch
      %10 = sbr.rel target = $region3
    $region8: #{textcnn_forward.1} parent=1 // loop_exit
      _
    %965 = vsyncpa [#allocation3], 1
    %s966 = scalar_lea.sflag [#allocation3], 1
    %967 = vsyncpa %s966, 1

</llo_original>
